<compile_context>
chip_gen: v5e
topology: v5e:2x2
jax: 0.10.0
libtpu: 0.0.40
codegen_flags: <defaults>
</compile_context>

<pallas_src>
import jax
import jax.numpy as jnp
from jax.experimental import pallas as pl
from jax.experimental.pallas import tpu as pltpu


# ---------------------------------------------------------------------------
# Fused kernel: per-class pixel counts and per-class NLL sums in one sweep.
# Grid: (N, HW // tile_p).  Outputs are per-N partial sums, shape (C, 1) each.
# ---------------------------------------------------------------------------
def _fused_ce_kernel(logits_ref, t_ref, counts_out, nll_out, counts_acc, nll_acc):
    t_idx = pl.program_id(1)

    @pl.when(t_idx == 0)
    def _():
        counts_acc[...] = jnp.zeros_like(counts_acc)
        nll_acc[...] = jnp.zeros_like(nll_acc)

    logits = logits_ref[...].astype(jnp.float32)                  # (C, TP) f32
    t = t_ref[...]                                                # (1, TP) int32

    # log-sum-exp over the class (sublane) axis -> per-pixel lse.
    m = jnp.max(logits, axis=0, keepdims=True)                    # (1, TP)
    lse = m + jnp.log(jnp.sum(jnp.exp(logits - m), axis=0, keepdims=True))

    cls = jax.lax.broadcasted_iota(jnp.int32, logits.shape, 0)    # (C, TP)
    onehot = (t == cls).astype(jnp.float32)                       # (C, TP)

    # Pure VPU elementwise accumulation; cross-lane reduction deferred to epilogue.
    counts_acc[...] += onehot
    nll_acc[...] += onehot * (lse - logits)

    @pl.when(t_idx == pl.num_programs(1) - 1)
    def _():
        counts_out[...] = jnp.sum(counts_acc[...], axis=1, keepdims=True)   # (C, 1)
        nll_out[...] = jnp.sum(nll_acc[...], axis=1, keepdims=True)         # (C, 1)


# ---------------------------------------------------------------------------
# Wrapper
# ---------------------------------------------------------------------------
def custom_cross_entropy_loss(logits_nchw, target_nhw, tile_p=1024):
    n, c, h, w = logits_nchw.shape
    hw = h * w
    tile_p = min(tile_p, hw)
    assert hw % tile_p == 0, "H*W must be divisible by the lane tile size"
    # TODO(synk): add a masked tail tile (pl.when + mask) for H*W not divisible by tile_p.

    # Free reshapes only -- no transpose, no extra HBM pass.
    logits_ncp = logits_nchw.reshape(n, c, hw)
    target_n1p = target_nhw.reshape(n, 1, hw).astype(jnp.int32)

    grid = (n, hw // tile_p)

    counts_nc, nll_nc = pl.pallas_call(
        _fused_ce_kernel,
        out_shape=(jax.ShapeDtypeStruct((n, c, 1), jnp.float32),
                   jax.ShapeDtypeStruct((n, c, 1), jnp.float32)),
        grid_spec=pltpu.PrefetchScalarGridSpec(
            num_scalar_prefetch=0,
            grid=grid,
            in_specs=[
                pl.BlockSpec((pl.Squeezed(), c, tile_p), lambda b, i: (b, 0, i)),
                pl.BlockSpec((pl.Squeezed(), 1, tile_p), lambda b, i: (b, 0, i)),
            ],
            out_specs=[
                pl.BlockSpec((pl.Squeezed(), c, 1), lambda b, i: (b, 0, 0)),
                pl.BlockSpec((pl.Squeezed(), c, 1), lambda b, i: (b, 0, 0)),
            ],
            scratch_shapes=[
                pltpu.VMEM((c, tile_p), jnp.float32),
                pltpu.VMEM((c, tile_p), jnp.float32),
            ],
        ),
        compiler_params=pltpu.CompilerParams(
            # N axis is independent (megacore-shardable on v7x); pixel-tile axis is a
            # reduction into resident accumulators.
            dimension_semantics=("parallel", "arbitrary")),
    )(logits_ncp, target_n1p)

    # ---- O(C) glue: combine per-N partials, form class weights, finalize loss ----
    counts = jnp.sum(counts_nc, axis=0)[:, 0]        # (C,)  pixel count per class
    s_per_class = jnp.sum(nll_nc, axis=0)[:, 0]      # (C,)  sum of NLL per class
    total = jnp.sum(counts)
    class_freq = counts / total                       # assumes all classes present (as in PyTorch spec)
    class_weights = 1.0 / class_freq
    class_weights = class_weights / jnp.sum(class_weights)
    loss = jnp.sum(class_weights * s_per_class) / jnp.sum(class_weights * counts)
    return loss


# Pure-JAX reference (mirrors the PyTorch module) for a sanity check.
def _reference_loss(logits_nchw, target_nhw):
    n, c, h, w = logits_nchw.shape
    flat_labels = target_nhw.reshape(-1)
    counts = jnp.sum(
        (flat_labels[:, None] == jnp.arange(c)[None, :]).astype(jnp.float32), axis=0)
    freq = counts / jnp.sum(counts)
    cw = 1.0 / freq
    cw = cw / jnp.sum(cw)
    logp = jax.nn.log_softmax(logits_nchw.astype(jnp.float32), axis=1)
    logp_flat = jnp.transpose(logp, (0, 2, 3, 1)).reshape(-1, c)
    nll = -jnp.take_along_axis(logp_flat, flat_labels[:, None], axis=1)[:, 0]
    wt = cw[flat_labels]
    return jnp.sum(wt * nll) / jnp.sum(wt)


if __name__ == "__main__":
    key = jax.random.PRNGKey(0)
    k1, k2 = jax.random.split(key)

    N, C, H, W = 2, 4, 16, 16
    logits = jax.random.normal(k1, (N, C, H, W), dtype=jnp.float32)
    target = jax.random.randint(k2, (N, H, W), 0, C, dtype=jnp.int32)

    loss = custom_cross_entropy_loss(logits, target)
    loss = jax.block_until_ready(loss)

    ref = jax.block_until_ready(_reference_loss(logits, target))
    assert jnp.allclose(loss, ref, atol=1e-5, rtol=1e-5), (loss, ref)

    print("KERNEL_OK")
</pallas_src>

<mosaic_0001>
module attributes {stable_mosaic.version = 11 : i64} {
  func.func @_fused_ce_kernel(%arg0: i32, %arg1: i32, %arg2: memref<1x4x256xf32, #tpu.memory_space<vmem>>, %arg3: memref<1x1x256xi32, #tpu.memory_space<vmem>>, %arg4: memref<1x4x1xf32, #tpu.memory_space<vmem>>, %arg5: memref<1x4x1xf32, #tpu.memory_space<vmem>>, %arg6: memref<4x256xf32, #tpu.memory_space<vmem>>, %arg7: memref<4x256xf32, #tpu.memory_space<vmem>>) attributes {dimension_semantics = [#tpu.dimension_semantics<parallel>, #tpu.dimension_semantics<arbitrary>], iteration_bounds = array<i64: 2, 1>, scalar_prefetch = 0 : i64, scratch_operands = 2 : i64, tpu.core_type = #tpu.core_type<tc>, window_params = [{transform_indices = @transform_0, window_bounds = array<i64: 1, 4, 256>}, {transform_indices = @transform_1, window_bounds = array<i64: 1, 1, 256>}, {transform_indices = @transform_2, window_bounds = array<i64: 1, 4, 1>}, {transform_indices = @transform_3, window_bounds = array<i64: 1, 4, 1>}]} {
    %c0_i32 = arith.constant 0 : i32
    %0 = arith.cmpi eq, %arg1, %c0_i32 : i32
    %1 = arith.extui %0 : i1 to i32
    %c0_i32_0 = arith.constant 0 : i32
    %2 = arith.cmpi ne, %1, %c0_i32_0 : i32
    scf.if %2 {
      %cst_17 = arith.constant 0.000000e+00 : f32
      %33 = vector.broadcast %cst_17 : f32 to vector<4x256xf32>
      %c0_18 = arith.constant 0 : index
      %c0_19 = arith.constant 0 : index
      %34 = vector.load %arg6[%c0_18, %c0_19] : memref<4x256xf32, #tpu.memory_space<vmem>>, vector<4x256xf32>
      tpu.vector_store %arg6[%c0_18, %c0_19], %33 {strides = array<i32>} : memref<4x256xf32, #tpu.memory_space<vmem>>, vector<4x256xf32>,
      %cst_20 = arith.constant 0.000000e+00 : f32
      %35 = vector.broadcast %cst_20 : f32 to vector<4x256xf32>
      %c0_21 = arith.constant 0 : index
      %c0_22 = arith.constant 0 : index
      %36 = vector.load %arg7[%c0_21, %c0_22] : memref<4x256xf32, #tpu.memory_space<vmem>>, vector<4x256xf32>
      tpu.vector_store %arg7[%c0_21, %c0_22], %35 {strides = array<i32>} : memref<4x256xf32, #tpu.memory_space<vmem>>, vector<4x256xf32>,
    } else {
    }
    %c0 = arith.constant 0 : index
    %c0_1 = arith.constant 0 : index
    %c0_2 = arith.constant 0 : index
    %3 = vector.load %arg2[%c0, %c0_1, %c0_2] : memref<1x4x256xf32, #tpu.memory_space<vmem>>, vector<1x4x256xf32>
    %4 = vector.shape_cast %3 : vector<1x4x256xf32> to vector<4x256xf32>
    %c0_3 = arith.constant 0 : index
    %c0_4 = arith.constant 0 : index
    %c0_5 = arith.constant 0 : index
    %5 = vector.load %arg3[%c0_3, %c0_4, %c0_5] : memref<1x1x256xi32, #tpu.memory_space<vmem>>, vector<1x1x256xi32>
    %6 = vector.shape_cast %5 : vector<1x1x256xi32> to vector<1x256xi32>
    %cst = arith.constant dense<0xFF800000> : vector<256xf32>
    %7 = vector.multi_reduction <maximumf>, %4, %cst [0] : vector<4x256xf32> to vector<256xf32>
    %8 = vector.shape_cast %7 : vector<256xf32> to vector<1x256xf32>
    %9 = vector.broadcast %8 : vector<1x256xf32> to vector<4x256xf32>
    %10 = arith.subf %4, %9 : vector<4x256xf32>
    %11 = math.exp %10 : vector<4x256xf32>
    %cst_6 = arith.constant dense<0.000000e+00> : vector<256xf32>
    %12 = vector.multi_reduction <add>, %11, %cst_6 [0] : vector<4x256xf32> to vector<256xf32>
    %13 = vector.shape_cast %12 : vector<256xf32> to vector<1x256xf32>
    %14 = math.log %13 : vector<1x256xf32>
    %15 = arith.addf %8, %14 : vector<1x256xf32>
    %16 = tpu.iota {dimensions = array<i32: 0>} : vector<4x256xi32>
    %17 = vector.broadcast %6 : vector<1x256xi32> to vector<4x256xi32>
    %18 = arith.cmpi eq, %17, %16 : vector<4x256xi32>
    %19 = arith.extui %18 : vector<4x256xi1> to vector<4x256xi32>
    %20 = arith.sitofp %19 : vector<4x256xi32> to vector<4x256xf32>
    %c0_7 = arith.constant 0 : index
    %c0_8 = arith.constant 0 : index
    %21 = vector.load %arg6[%c0_7, %c0_8] : memref<4x256xf32, #tpu.memory_space<vmem>>, vector<4x256xf32>
    %22 = arith.addf %21, %20 : vector<4x256xf32>
    %c0_9 = arith.constant 0 : index
    %c0_10 = arith.constant 0 : index
    %23 = vector.load %arg6[%c0_9, %c0_10] : memref<4x256xf32, #tpu.memory_space<vmem>>, vector<4x256xf32>
    tpu.vector_store %arg6[%c0_9, %c0_10], %22 {strides = array<i32>} : memref<4x256xf32, #tpu.memory_space<vmem>>, vector<4x256xf32>,
    %c0_11 = arith.constant 0 : index
    %c0_12 = arith.constant 0 : index
    %24 = vector.load %arg7[%c0_11, %c0_12] : memref<4x256xf32, #tpu.memory_space<vmem>>, vector<4x256xf32>
    %25 = vector.broadcast %15 : vector<1x256xf32> to vector<4x256xf32>
    %26 = arith.subf %25, %4 : vector<4x256xf32>
    %27 = arith.mulf %20, %26 : vector<4x256xf32>
    %28 = arith.addf %24, %27 : vector<4x256xf32>
    %c0_13 = arith.constant 0 : index
    %c0_14 = arith.constant 0 : index
    %29 = vector.load %arg7[%c0_13, %c0_14] : memref<4x256xf32, #tpu.memory_space<vmem>>, vector<4x256xf32>
    tpu.vector_store %arg7[%c0_13, %c0_14], %28 {strides = array<i32>} : memref<4x256xf32, #tpu.memory_space<vmem>>, vector<4x256xf32>,
    %c0_i32_15 = arith.constant 0 : i32
    %30 = arith.cmpi eq, %arg1, %c0_i32_15 : i32
    %31 = arith.extui %30 : i1 to i32
    %c0_i32_16 = arith.constant 0 : i32
    %32 = arith.cmpi ne, %31, %c0_i32_16 : i32
    scf.if %32 {
      %c0_17 = arith.constant 0 : index
      %c0_18 = arith.constant 0 : index
      %33 = vector.load %arg6[%c0_17, %c0_18] : memref<4x256xf32, #tpu.memory_space<vmem>>, vector<4x256xf32>
      %cst_19 = arith.constant dense<0.000000e+00> : vector<4xf32>
      %34 = vector.multi_reduction <add>, %33, %cst_19 [1] : vector<4x256xf32> to vector<4xf32>
      %35 = vector.shape_cast %34 : vector<4xf32> to vector<4x1xf32>
      %c0_20 = arith.constant 0 : index
      %c0_21 = arith.constant 0 : index
      %c0_22 = arith.constant 0 : index
      %36 = vector.load %arg4[%c0_20, %c0_21, %c0_22] : memref<1x4x1xf32, #tpu.memory_space<vmem>>, vector<1x4x1xf32>
      %37 = vector.shape_cast %36 : vector<1x4x1xf32> to vector<4x1xf32>
      %38 = vector.shape_cast %35 : vector<4x1xf32> to vector<1x4x1xf32>
      tpu.vector_store %arg4[%c0_20, %c0_21, %c0_22], %38 {strides = array<i32>} : memref<1x4x1xf32, #tpu.memory_space<vmem>>, vector<1x4x1xf32>,
      %c0_23 = arith.constant 0 : index
      %c0_24 = arith.constant 0 : index
      %39 = vector.load %arg7[%c0_23, %c0_24] : memref<4x256xf32, #tpu.memory_space<vmem>>, vector<4x256xf32>
      %cst_25 = arith.constant dense<0.000000e+00> : vector<4xf32>
      %40 = vector.multi_reduction <add>, %39, %cst_25 [1] : vector<4x256xf32> to vector<4xf32>
      %41 = vector.shape_cast %40 : vector<4xf32> to vector<4x1xf32>
      %c0_26 = arith.constant 0 : index
      %c0_27 = arith.constant 0 : index
      %c0_28 = arith.constant 0 : index
      %42 = vector.load %arg5[%c0_26, %c0_27, %c0_28] : memref<1x4x1xf32, #tpu.memory_space<vmem>>, vector<1x4x1xf32>
      %43 = vector.shape_cast %42 : vector<1x4x1xf32> to vector<4x1xf32>
      %44 = vector.shape_cast %41 : vector<4x1xf32> to vector<1x4x1xf32>
      tpu.vector_store %arg5[%c0_26, %c0_27, %c0_28], %44 {strides = array<i32>} : memref<1x4x1xf32, #tpu.memory_space<vmem>>, vector<1x4x1xf32>,
    } else {
    }
    return
  }
  func.func @transform_0(%arg0: i32, %arg1: i32) -> (i32, i32, i32) {
    %c0_i32 = arith.constant 0 : i32
    %c0_i32_0 = arith.constant 0 : i32
    return %arg0, %c0_i32, %arg1 : i32, i32, i32
  }
  func.func @transform_1(%arg0: i32, %arg1: i32) -> (i32, i32, i32) {
    %c0_i32 = arith.constant 0 : i32
    %c0_i32_0 = arith.constant 0 : i32
    return %arg0, %c0_i32, %arg1 : i32, i32, i32
  }
  func.func @transform_2(%arg0: i32, %arg1: i32) -> (i32, i32, i32) {
    %c0_i32 = arith.constant 0 : i32
    %c0_i32_0 = arith.constant 0 : i32
    %c0_i32_1 = arith.constant 0 : i32
    return %arg0, %c0_i32, %c0_i32_0 : i32, i32, i32
  }
  func.func @transform_3(%arg0: i32, %arg1: i32) -> (i32, i32, i32) {
    %c0_i32 = arith.constant 0 : i32
    %c0_i32_0 = arith.constant 0 : i32
    %c0_i32_1 = arith.constant 0 : i32
    return %arg0, %c0_i32, %c0_i32_0 : i32, i32, i32
  }
}

</mosaic_0001>

<llo_original>
// kernel: tpu_custom_call.1
$region0: #{tpu_custom_call.1}
  #allocation0 [shape = 'u32[]', space=smem, size = 0x4, offset = 0x4, fixed_abs, tag = 'smem constant byte address 0x4 - core index']
  #allocation1 [shape = 'u32[72,128]{1,0:T(1,128)}', space=vmem, size = 0x9000, scoped, tag = 'internal scratch']
  #allocation2 [shape = 'f32[4,256]{1,0:T(4,128)}', space=vmem, size = 0x1000, scoped, tag = 'scratch operand']
  #allocation3 [shape = 'f32[4,256]{1,0:T(4,128)}', space=vmem, size = 0x1000, scoped, tag = 'scratch operand']
  %s0 = inlined_call_operand.hbm [shape: f32[2,4,256], index: 0, kind: input, shape index: {}]
  %s1 = inlined_call_operand.hbm [shape: s32[2,1,256], index: 1, kind: input, shape index: {}]
  %s2 = inlined_call_operand.vmem [shape: f32[2,4,1], index: 2, kind: output, shape index: {0}]
  %s3 = inlined_call_operand.vmem [shape: f32[2,4,1], index: 3, kind: output, shape index: {1}]
  %4 = xla_tuple %s2, %s3
  %s5 = sld [smem:[#allocation0]]
  $region65: #{tpu_custom_call.1} parent=0
    _
  %s7 = ssub.s32 1, %s5
  %s8 = scalar_select 0, %s7, %s5
  $region1: #{tpu_custom_call.1} parent=0
    #allocation4 [shape = 'u8[8192]{0}', space=vmem, size = 0x2000, scoped, tag = 'input window, operand 0']
    #allocation5 [shape = 's32[2]{0}', space=sflag, size = 0x8, scoped, tag = 'scoped memory for tpu_custom_call.1']
    #allocation6 [shape = 'u8[2048]{0}', space=vmem, size = 0x800, scoped, tag = 'input window, operand 1']
    #allocation7 [shape = 's32[2]{0}', space=sflag, size = 0x8, scoped, tag = 'scoped memory for tpu_custom_call.1']
    %9 = vsyncpa [#allocation5], 0
    %s10 = scalar_lea.sflag [#allocation5], 1
    %11 = vsyncpa %s10, 0
    %12 = vsyncpa [#allocation7], 0
    %s13 = scalar_lea.sflag [#allocation7], 1
    %14 = vsyncpa %s13, 0
    loop: start=0, step=1, limit=4
    $region2: #{tpu_custom_call.1} parent=1 // loop_pre_header
      _
    $region3: #{tpu_custom_call.1} parent=1 // loop_header
      %s16 = sphi 0, %s20
      %p17 = scmp.ge.s32.totalorder %s16, 4
      %s23 = sphi 0, %s35
      %s24 = sphi 0, %s31
      %s25 = sphi 0, %s23
      %s26 = sphi 0, %s24
      %s27 = sphi 0, %s25
      %s28 = sphi 0, %s26
      %s40 = sphi 0, %s42
      %s43 = sphi 0, %s40
      %s44 = sphi 0, %s43
      %s60 = sphi 0, %s44
      %s68 = sphi 0, %s70
      %s71 = sphi 0, %s68
      %s72 = sphi 0, %s71
      %s88 = sphi 0, %s72
      %s94 = sphi 0, %s96
      %s97 = sphi 0, %s94
      %s98 = sphi 0, %s97
      %s114 = sphi 0, %s98
      %s120 = sphi 0, %s122
      %s123 = sphi 0, %s120
      %s124 = sphi 0, %s123
      %s140 = sphi 0, %s124
    $region4: #{tpu_custom_call.1} parent=1 // loop_header_branch
      %19 = sbr.rel (%p17) target = $region8
    $region5: #{tpu_custom_call.1} parent=1 // loop_body
      %s21 = ssub.s32 %s16, 1
      %s22 = ssub.s32 %s16, 2
      %s29 = sadd.s32 1, %s24
      %p30 = scmp.ge.s32.totalorder %s29, 1
      %s31 = scalar_select %p30, 0, %s29
      %s32 = sadd.s32 1, %s23
      %s33 = scalar_select %p30, %s32, %s23
      %p34 = scmp.ge.s32.totalorder %s33, 2
      %s35 = scalar_select %p34, 0, %s33
      %s36 = ssub.s32 %s23, %s35
      %s37 = ssub.s32 %s24, %s31
      %s38 = sor.u32 %s36, %s37
      %p39 = scmp.eq.s32.totalorder %s38, 0
      %s41 = sadd.s32 %s40, 1
      %s42 = scalar_select %p39, %s40, %s41
      %p45 = pneg %p39
      %p46 = scmp.eq.s32.totalorder %s16, 1
      %p47 = por %p45, %p46
      %p48 = scmp.ne.s32.totalorder %s40, %s43
      %p49 = scmp.eq.s32.totalorder %s16, 0
      %p50 = por %p48, %p49
      %p51 = scmp.ne.s32.totalorder %s40, %s43
      %p52 = scmp.eq.s32.totalorder %s21, 1
      %p53 = por %p51, %p52
      %p54 = scmp.ne.s32.totalorder %s43, %s44
      %p55 = scmp.eq.s32.totalorder %s21, 0
      %p56 = por %p54, %p55
      %p57 = scmp.ne.s32.totalorder %s43, %s44
      %p58 = scmp.eq.s32.totalorder %s22, 1
      %p59 = por %p57, %p58
      %p61 = scmp.ne.s32.totalorder %s44, %s60
      %p62 = scmp.eq.s32.totalorder %s22, 0
      %p63 = por %p61, %p62
      %s64 = ssub.s32 %s23, %s35
      %s65 = ssub.s32 %s24, %s31
      %s66 = sor.u32 %s64, %s65
      %p67 = scmp.eq.s32.totalorder %s66, 0
      %s69 = sadd.s32 %s68, 1
      %s70 = scalar_select %p67, %s68, %s69
      %p73 = pneg %p67
      %p74 = scmp.eq.s32.totalorder %s16, 1
      %p75 = por %p73, %p74
      %p76 = scmp.ne.s32.totalorder %s68, %s71
      %p77 = scmp.eq.s32.totalorder %s16, 0
      %p78 = por %p76, %p77
      %p79 = scmp.ne.s32.totalorder %s68, %s71
      %p80 = scmp.eq.s32.totalorder %s21, 1
      %p81 = por %p79, %p80
      %p82 = scmp.ne.s32.totalorder %s71, %s72
      %p83 = scmp.eq.s32.totalorder %s21, 0
      %p84 = por %p82, %p83
      %p85 = scmp.ne.s32.totalorder %s71, %s72
      %p86 = scmp.eq.s32.totalorder %s22, 1
      %p87 = por %p85, %p86
      %p89 = scmp.ne.s32.totalorder %s72, %s88
      %p90 = scmp.eq.s32.totalorder %s22, 0
      %p91 = por %p89, %p90
      %s92 = ssub.s32 %s23, %s35
      %p93 = scmp.eq.s32.totalorder %s92, 0
      %s95 = sadd.s32 %s94, 1
      %s96 = scalar_select %p93, %s94, %s95
      %p99 = pneg %p93
      %p100 = scmp.eq.s32.totalorder %s16, 1
      %p101 = por %p99, %p100
      %p102 = scmp.ne.s32.totalorder %s94, %s97
      %p103 = scmp.eq.s32.totalorder %s16, 0
      %p104 = por %p102, %p103
      %p105 = scmp.ne.s32.totalorder %s94, %s97
      %p106 = scmp.eq.s32.totalorder %s21, 1
      %p107 = por %p105, %p106
      %p108 = scmp.ne.s32.totalorder %s97, %s98
      %p109 = scmp.eq.s32.totalorder %s21, 0
      %p110 = por %p108, %p109
      %p111 = scmp.ne.s32.totalorder %s97, %s98
      %p112 = scmp.eq.s32.totalorder %s22, 1
      %p113 = por %p111, %p112
      %p115 = scmp.ne.s32.totalorder %s98, %s114
      %p116 = scmp.eq.s32.totalorder %s22, 0
      %p117 = por %p115, %p116
      %s118 = ssub.s32 %s23, %s35
      %p119 = scmp.eq.s32.totalorder %s118, 0
      %s121 = sadd.s32 %s120, 1
      %s122 = scalar_select %p119, %s120, %s121
      %p125 = pneg %p119
      %p126 = scmp.eq.s32.totalorder %s16, 1
      %p127 = por %p125, %p126
      %p128 = scmp.ne.s32.totalorder %s120, %s123
      %p129 = scmp.eq.s32.totalorder %s16, 0
      %p130 = por %p128, %p129
      %p131 = scmp.ne.s32.totalorder %s120, %s123
      %p132 = scmp.eq.s32.totalorder %s21, 1
      %p133 = por %p131, %p132
      %p134 = scmp.ne.s32.totalorder %s123, %s124
      %p135 = scmp.eq.s32.totalorder %s21, 0
      %p136 = por %p134, %p135
      %p137 = scmp.ne.s32.totalorder %s123, %s124
      %p138 = scmp.eq.s32.totalorder %s22, 1
      %p139 = por %p137, %p138
      %p141 = scmp.ne.s32.totalorder %s124, %s140
      %p142 = scmp.eq.s32.totalorder %s22, 0
      %p143 = por %p141, %p142
      %p144 = scmp.le.s32.totalorder 1, %s16
      %p145 = scmp.lt.s32.totalorder %s16, 3
      %p146 = pnand %p144, %p145
      %p147 = pneg %p146
      // Predicated region
      $region9: #{tpu_custom_call.1} parent=5 // pred_check
        _
      $region10: #{tpu_custom_call.1} parent=5 // pred_check_branch
        %149 = sbr.rel (%p146) target = $region12
      $region11: #{tpu_custom_call.1} parent=5 // pred_region
        %s150 = ssub.s32 %s16, 1
      $region12: #{tpu_custom_call.1} parent=5 // pred_fallthru
        _
      %p151 = scmp.lt.s32.totalorder %s16, 2
      // Predicated region
      $region13: #{tpu_custom_call.1} parent=5 // pred_check
        %p152 = pneg %p151
      $region14: #{tpu_custom_call.1} parent=5 // pred_check_branch
        %154 = sbr.rel (%p152) target = $region16
      $region15: #{tpu_custom_call.1} parent=5 // pred_region
        // Predicated region
        $region17: #{tpu_custom_call.1} parent=15 // pred_check
          %p155 = pneg %p50
        $region18: #{tpu_custom_call.1} parent=15 // pred_check_branch
          %157 = sbr.rel (%p155) target = $region20
        $region19: #{tpu_custom_call.1} parent=15 // pred_region
          %s158 = sand.u32 %s40, 1
          %s159 = scalar_lea.sflag [#allocation5], %s158
          %s160 = sand.u32 %s40, 1
          %s161 = smul.addr %s160, 8
          %s162 = scalar_lea.vmem [#allocation4], %s161
          %s163 = smul.u32 2, %s24
          %165 = vsyncadd %s159, 0
          %s166 = smul.addr %s23, 2
          %s167 = sadd.s32 %s163, %s166
          %s168 = smul.addr %s167, 4
          %s169 = scalar_lea.hbm %s0, %s168
          %s171 = sshll.u32 %s169, 4
          %s172 = int_to_ptr.hbm [resolvable:$true] %s171
          %s173 = sshll.u32 %s162, 4
          %s174 = int_to_ptr.vmem [resolvable:$true] %s173
          %176 = dma.hbm_to_vmem [thread:$0]  %s172, 128, %s174, %s159
        $region20: #{tpu_custom_call.1} parent=15 // pred_fallthru
          _
        // Predicated region
        $region21: #{tpu_custom_call.1} parent=15 // pred_check
          %p177 = pneg %p78
        $region22: #{tpu_custom_call.1} parent=15 // pred_check_branch
          %179 = sbr.rel (%p177) target = $region24
        $region23: #{tpu_custom_call.1} parent=15 // pred_region
          %s180 = sand.u32 %s68, 1
          %s181 = scalar_lea.sflag [#allocation7], %s180
          %s182 = sand.u32 %s68, 1
          %s183 = smul.addr %s182, 2
          %s184 = scalar_lea.vmem [#allocation6], %s183
          %s185 = smul.u32 2, %s24
          %187 = vsyncadd %s181, 0
          %s188 = smul.addr %s23, 2
          %s189 = sadd.s32 %s185, %s188
          %s190 = scalar_lea.hbm %s1, %s189
          %s192 = sshll.u32 %s190, 4
          %s193 = int_to_ptr.hbm [resolvable:$true] %s192
          %s194 = sshll.u32 %s184, 4
          %s195 = int_to_ptr.vmem [resolvable:$true] %s194
          %197 = dma.hbm_to_vmem [thread:$0]  %s193, 32, %s195, %s181
        $region24: #{tpu_custom_call.1} parent=15 // pred_fallthru
          _
      $region16: #{tpu_custom_call.1} parent=5 // pred_fallthru
        _
      %p198 = scmp.le.s32.totalorder 1, %s16
      %p199 = scmp.lt.s32.totalorder %s16, 3
      %p200 = pnand %p198, %p199
      %p201 = pneg %p200
      // Predicated region
      $region25: #{tpu_custom_call.1} parent=5 // pred_check
        _
      $region26: #{tpu_custom_call.1} parent=5 // pred_check_branch
        %203 = sbr.rel (%p200) target = $region28
      $region27: #{tpu_custom_call.1} parent=5 // pred_region
        %s204 = ssub.s32 %s16, 1
        %s205 = sand.u32 %s43, 1
        %s206 = scalar_lea.sflag [#allocation5], %s205
        %s207 = sand.u32 %s43, 1
        %s208 = smul.addr %s207, 8
        %s209 = scalar_lea.vmem [#allocation4], %s208
        // Predicated region
        $region29: #{tpu_custom_call.1} parent=27 // pred_check
          %p210 = pneg %p56
        $region30: #{tpu_custom_call.1} parent=27 // pred_check_branch
          %212 = sbr.rel (%p210) target = $region32
        $region31: #{tpu_custom_call.1} parent=27 // pred_region
          %214 = dma.done %s206, 128
        $region32: #{tpu_custom_call.1} parent=27 // pred_fallthru
          _
        %s215 = sand.u32 %s71, 1
        %s216 = scalar_lea.sflag [#allocation7], %s215
        %s217 = sand.u32 %s71, 1
        %s218 = smul.addr %s217, 2
        %s219 = scalar_lea.vmem [#allocation6], %s218
        // Predicated region
        $region33: #{tpu_custom_call.1} parent=27 // pred_check
          %p220 = pneg %p84
        $region34: #{tpu_custom_call.1} parent=27 // pred_check_branch
          %222 = sbr.rel (%p220) target = $region36
        $region35: #{tpu_custom_call.1} parent=27 // pred_region
          %224 = dma.done %s216, 32
        $region36: #{tpu_custom_call.1} parent=27 // pred_fallthru
          _
        %s225 = sand.u32 %s43, 1
        %s226 = scalar_lea.sflag [#allocation5], %s225
        %s227 = sand.u32 %s43, 1
        %s228 = smul.addr %s227, 8
        %s229 = scalar_lea.vmem [#allocation4], %s228
        %p230 = pneg %p56
        %p231 = pneg %p53
        %s232 = sand.u32 %s71, 1
        %s233 = scalar_lea.sflag [#allocation7], %s232
        %s234 = sand.u32 %s71, 1
        %s235 = smul.addr %s234, 2
        %s236 = scalar_lea.vmem [#allocation6], %s235
        %p237 = pneg %p84
        %p238 = pneg %p81
        %p239 = pneg %p110
        %p240 = pneg %p107
        %p241 = scmp.lt.s32.totalorder %s25, 1
        %s242 = scalar_select %p241, %s25, 1
        %s243 = smul.addr %s242, 4
        %s244 = scalar_lea.vmem %s2, %s243
        %p245 = pneg %p136
        %p246 = pneg %p133
        %p247 = scmp.lt.s32.totalorder %s25, 1
        %s248 = scalar_select %p247, %s25, 1
        %s249 = smul.addr %s248, 4
        %s250 = scalar_lea.vmem %s3, %s249
        %s251 = smul.u32 2, %s26
        %s252 = smul.u32 2, %s26
        %p253 = scmp.lt.s32.totalorder %s25, 1
        %s254 = scalar_select %p253, %s25, 1
        %s255 = smul.addr %s254, 4
        %s256 = scalar_lea.vmem %s2, %s255
        %p257 = scmp.lt.s32.totalorder %s25, 1
        %s258 = scalar_select %p257, %s25, 1
        %s259 = smul.addr %s258, 4
        %s260 = scalar_lea.vmem %s3, %s259
        %p261 = scmp.eq.s32.totalorder %s26, 0
        // Predicated region
        $region37: #{tpu_custom_call.1} parent=27 // pred_check
          %p262 = pneg %p261
        $region38: #{tpu_custom_call.1} parent=27 // pred_check_branch
          %264 = sbr.rel (%p262) target = $region40
        $region39: #{tpu_custom_call.1} parent=27 // pred_region
          %265 = vst [vmem:[#allocation2] sm:$0xff] 0.0
          %266 = vst [vmem:[#allocation3] sm:$0xff] 0.0
        $region40: #{tpu_custom_call.1} parent=27 // pred_fallthru
          _
        %v267 = vld [vmem:[%s209] sm:$0xff]
        %v268 = vld [vmem:[%s219] sm:$0x3]
        %270 = vst [vmem:[#allocation1] ss:$2 sm:$0xff] %v267
        %v271 = vld.sshfl [vmem:[#allocation1] sm:$0xff pattern:$0x75316420]
        %v272 = vld.sshfl [vmem:[#allocation1 + $0x8] sm:$0xff pattern:$0x75316420]
        %vm275 = vcmask 1043456
        %v276 = vsel %vm275, %v271, -inf
        %v277 = vrot.slane %v276, 4
        %v278 = vmax.f32 %v276, %v277
        %v279 = vrot.slane %v278, 2
        %v280 = vmax.f32 %v278, %v279
        %v281 = vrot.slane %v280, 1
        %v282 = vmax.f32 %v280, %v281
        %v283 = vsel %vm275, %v272, -inf
        %v284 = vrot.slane %v283, 4
        %v285 = vmax.f32 %v283, %v284
        %v286 = vrot.slane %v285, 2
        %v287 = vmax.f32 %v285, %v286
        %v288 = vrot.slane %v287, 1
        %v289 = vmax.f32 %v287, %v288
        %v292 = vrot.slane %v289, 4
        %v293 = vsel %vm275, %v282, %v292
        %v295 = vsub.f32 %v267, %v293
        %v296 = vmul.f32 %v295, 1.442695
        %v297 = vpow.pop %v296
        %299 = vst [vmem:[#allocation1] ss:$2 sm:$0xff] %v297
        %v300 = vld.sshfl [vmem:[#allocation1] sm:$0xff pattern:$0x75316420]
        %v301 = vld.sshfl [vmem:[#allocation1 + $0x8] sm:$0xff pattern:$0x75316420]
        %v304 = vsel %vm275, %v300, 0.0
        %v305 = vrot.slane %v304, 4
        %v306 = vadd.f32 %v304, %v305
        %v307 = vrot.slane %v306, 2
        %v308 = vadd.f32 %v306, %v307
        %v309 = vrot.slane %v308, 1
        %v310 = vadd.f32 %v308, %v309
        %v311 = vsel %vm275, %v301, 0.0
        %v312 = vrot.slane %v311, 4
        %v313 = vadd.f32 %v311, %v312
        %v314 = vrot.slane %v313, 2
        %v315 = vadd.f32 %v313, %v314
        %v316 = vrot.slane %v315, 1
        %v317 = vadd.f32 %v315, %v316
        %v318 = vlog2.pop %v310
        %v319 = vmul.f32 %v318, 0.6931472
        %v320 = vlog2.pop %v317
        %v321 = vmul.f32 %v320, 0.6931472
        %v322 = vadd.f32 %v282, %v319
        %v323 = vadd.f32 %v289, %v321
        %v324 = vlaneseq
        %v325 = vshrl.u32 %v324, 7
        %v326 = vperm.slane %v268, 0
        %v327 = vperm.slane %v268, 1
        %vm328 = vcmp.eq.s32.totalorder %v326, %v325
        %vm329 = vcmp.eq.s32.totalorder %v327, %v325
        %v330 = vsel %vm328, 1, 0
        %v331 = vsel %vm329, 1, 0
        %v332 = vcvt.s32.f32 %v330
        %v333 = vcvt.s32.f32 %v331
        %v334 = vld [vmem:[#allocation2] sm:$0xff]
        %v337 = vrot.slane %v333, 4
        %v338 = vsel %vm275, %v332, %v337
        %v340 = vadd.f32 %v334, %v338
        %341 = vst [vmem:[#allocation2] sm:$0xff] %v340
        %v342 = vld [vmem:[#allocation3] sm:$0xff]
        %343 = vst [vmem:[#allocation1] ss:$2 sm:$0xff] %v267
        %v344 = vld.sshfl [vmem:[#allocation1] sm:$0xff pattern:$0x75316420]
        %v345 = vld.sshfl [vmem:[#allocation1 + $0x8] sm:$0xff pattern:$0x75316420]
        %v348 = vsub.f32 %v322, %v344
        %v349 = vsub.f32 %v323, %v345
        %v350 = vmul.f32 %v332, %v348
        %v351 = vmul.f32 %v333, %v349
        %v354 = vrot.slane %v351, 4
        %v355 = vsel %vm275, %v350, %v354
        %v357 = vadd.f32 %v342, %v355
        %358 = vst [vmem:[#allocation3] sm:$0xff] %v357
        // Predicated region
        $region41: #{tpu_custom_call.1} parent=27 // pred_check
          %p359 = pneg %p261
        $region42: #{tpu_custom_call.1} parent=27 // pred_check_branch
          %361 = sbr.rel (%p359) target = $region44
        $region43: #{tpu_custom_call.1} parent=27 // pred_region
          %v362 = vld [vmem:[#allocation2] sm:$0xff]
          %364 = vst [vmem:[#allocation1] ss:$2 sm:$0xff] %v362
          %v365 = vld.sshfl [vmem:[#allocation1] sm:$0xff pattern:$0x75316420]
          %v366 = vld.sshfl [vmem:[#allocation1 + $0x8] sm:$0xff pattern:$0x75316420]
          %v369 = vsel %vm275, %v365, 0.0
          %v370 = vsel %vm275, %v366, 0.0
          %v371 = vadd.f32 %v369, %v370
          %372 = vadd.xlane.f32.xlu0 %v371
          %v373 = vpop.xlane.xlu0 %372
          %vm374 = vcmask 3072
          %375 = vst.msk [vmem:[%s256] sm:$0xf] %vm374, %v373
          %v376 = vld [vmem:[#allocation3] sm:$0xff]
          %378 = vst [vmem:[#allocation1] ss:$2 sm:$0xff] %v376
          %v379 = vld.sshfl [vmem:[#allocation1] sm:$0xff pattern:$0x75316420]
          %v380 = vld.sshfl [vmem:[#allocation1 + $0x8] sm:$0xff pattern:$0x75316420]
          %v383 = vsel %vm275, %v379, 0.0
          %v384 = vsel %vm275, %v380, 0.0
          %v385 = vadd.f32 %v383, %v384
          %386 = vadd.xlane.f32.xlu0 %v385
          %v387 = vpop.xlane.xlu0 %386
          %388 = vst.msk [vmem:[%s260] sm:$0xf] %vm374, %v387
        $region44: #{tpu_custom_call.1} parent=27 // pred_fallthru
          _
        %p389 = scmp.lt.s32.totalorder %s25, 1
        %s390 = scalar_select %p389, %s25, 1
        %s391 = smul.addr %s390, 4
        %s392 = scalar_lea.vmem %s2, %s391
        %p393 = scmp.lt.s32.totalorder %s25, 1
        %s394 = scalar_select %p393, %s25, 1
        %s395 = smul.addr %s394, 4
        %s396 = scalar_lea.vmem %s3, %s395
        // Predicated region
        $region45: #{tpu_custom_call.1} parent=27 // pred_check
          %p397 = pneg %p107
        $region46: #{tpu_custom_call.1} parent=27 // pred_check_branch
          %399 = sbr.rel (%p397) target = $region48
        $region47: #{tpu_custom_call.1} parent=27 // pred_region
          _
        $region48: #{tpu_custom_call.1} parent=27 // pred_fallthru
          _
        // Predicated region
        $region49: #{tpu_custom_call.1} parent=27 // pred_check
          %p400 = pneg %p133
        $region50: #{tpu_custom_call.1} parent=27 // pred_check_branch
          %402 = sbr.rel (%p400) target = $region52
        $region51: #{tpu_custom_call.1} parent=27 // pred_region
          _
        $region52: #{tpu_custom_call.1} parent=27 // pred_fallthru
          _
      $region28: #{tpu_custom_call.1} parent=5 // pred_fallthru
        _
      %p403 = scmp.le.s32.totalorder 2, %s16
      // Predicated region
      $region53: #{tpu_custom_call.1} parent=5 // pred_check
        %p404 = pneg %p403
      $region54: #{tpu_custom_call.1} parent=5 // pred_check_branch
        %406 = sbr.rel (%p404) target = $region56
      $region55: #{tpu_custom_call.1} parent=5 // pred_region
        %s407 = ssub.s32 %s16, 2
        // Predicated region
        $region57: #{tpu_custom_call.1} parent=55 // pred_check
          %p408 = pneg %p113
        $region58: #{tpu_custom_call.1} parent=55 // pred_check_branch
          %410 = sbr.rel (%p408) target = $region60
        $region59: #{tpu_custom_call.1} parent=55 // pred_region
          %p411 = scmp.lt.s32.totalorder %s27, 1
          %s412 = scalar_select %p411, %s27, 1
          %s413 = smul.addr %s412, 4
          %s414 = scalar_lea.vmem %s2, %s413
        $region60: #{tpu_custom_call.1} parent=55 // pred_fallthru
          _
        // Predicated region
        $region61: #{tpu_custom_call.1} parent=55 // pred_check
          %p415 = pneg %p139
        $region62: #{tpu_custom_call.1} parent=55 // pred_check_branch
          %417 = sbr.rel (%p415) target = $region64
        $region63: #{tpu_custom_call.1} parent=55 // pred_region
          %p418 = scmp.lt.s32.totalorder %s27, 1
          %s419 = scalar_select %p418, %s27, 1
          %s420 = smul.addr %s419, 4
          %s421 = scalar_lea.vmem %s3, %s420
        $region64: #{tpu_custom_call.1} parent=55 // pred_fallthru
          _
      $region56: #{tpu_custom_call.1} parent=5 // pred_fallthru
        _
    $region6: #{tpu_custom_call.1} parent=1 // loop_footer
      %s20 = sadd.s32 1, %s16
    $region7: #{tpu_custom_call.1} parent=1 // loop_footer_branch
      %15 = sbr.rel target = $region3
    $region8: #{tpu_custom_call.1} parent=1 // loop_exit
      _
    %422 = vsyncpa [#allocation5], 1
    %s423 = scalar_lea.sflag [#allocation5], 1
    %424 = vsyncpa %s423, 1
    %425 = vsyncpa [#allocation7], 1
    %s426 = scalar_lea.sflag [#allocation7], 1
    %427 = vsyncpa %s426, 1

</llo_original>
